<compile_context>
chip_gen: v7x
topology: tpu7x:2x2x1
jax: 0.10.0
libtpu: 0.0.40
codegen_flags: <defaults>
</compile_context>

<pallas_src>
import functools

import jax
import jax.numpy as jnp
from jax import lax
from jax.experimental import pallas as pl
from jax.experimental.pallas import tpu as pltpu

_LANE = 128
_SUBLANE_BF16 = 16


def _round_up(n, m):
    return ((n + m - 1) // m) * m


def _self_attention_kernel(x_ref, w_qkv_ref, o_ref, *, seq, d_out_p):
    # bf16 operands into the MXU, f32 accumulation out of it.
    x = x_ref[...]                                # [seq_p, d_in_p]   bf16
    w_qkv = w_qkv_ref[...]                        # [3*d_out_p, d_in_p] bf16

    # Fused Q/K/V projection: one wide matmul, contracting on the last dim of
    # both operands (== x @ W_qkv.T without materializing any transpose).
    # NOTE: 1/sqrt(d_out) is already folded into the W_query rows (wrapper).
    qkv = lax.dot_general(
        x, w_qkv,
        dimension_numbers=(((1,), (1,)), ((), ())),
        preferred_element_type=jnp.float32,
    )                                             # [seq_p, 3*d_out_p] f32
    q = qkv[:, 0 * d_out_p:1 * d_out_p].astype(jnp.bfloat16)
    k = qkv[:, 1 * d_out_p:2 * d_out_p].astype(jnp.bfloat16)
    v = qkv[:, 2 * d_out_p:3 * d_out_p].astype(jnp.bfloat16)

    # attn_scores = (scaled Q) @ K^T, transpose-free contraction on last dims.
    scores = lax.dot_general(
        q, k,
        dimension_numbers=(((1,), (1,)), ((), ())),
        preferred_element_type=jnp.float32,
    )                                             # [seq_p, seq_p] f32

    # Padded x rows produce zero K rows -> zero score columns, which would
    # corrupt the softmax denominator.  Mask padded key columns to -inf-ish.
    key_valid = lax.broadcasted_iota(jnp.int32, scores.shape, 1) < seq
    scores = jnp.where(key_valid, scores, -1e30)

    # Numerically-stable softmax over keys, f32 vector math.
    m = jnp.max(scores, axis=-1, keepdims=True)
    e = jnp.exp(scores - m)
    inv_denom = pl.reciprocal(jnp.sum(e, axis=-1, keepdims=True), approx=True)
    p = (e * inv_denom).astype(jnp.bfloat16)

    # context_vec = attn_weights @ V  (lane-dense [seq_p, d_out_p] store).
    o_ref[...] = jnp.dot(
        p, v, preferred_element_type=jnp.float32
    ).astype(o_ref.dtype)


def self_attention_v2(x, w_query, w_key, w_value):
    """x: [seq, d_in]; w_*: [d_out, d_in] (PyTorch nn.Linear weight layout).

    Returns context vectors of shape [seq, d_out], matching
    SelfAttention_v2.forward(x).
    """
    seq, d_in = x.shape
    d_out = w_query.shape[0]
    seq_p = _round_up(max(seq, _SUBLANE_BF16), _SUBLANE_BF16)
    d_in_p = _round_up(d_in, _LANE)
    d_out_p = _round_up(d_out, _LANE)

    scale = 1.0 / (d_out ** 0.5)   # matches keys.shape[-1] ** 0.5

    # Lane- and sublane-dense zero padding; cast MXU operands to bf16.
    x_p = jnp.pad(
        x, ((0, seq_p - seq), (0, d_in_p - d_in))
    ).astype(jnp.bfloat16)

    def pad_w(w):  # [d_out, d_in] -> [d_out_p, d_in_p]; no transpose, ever.
        return jnp.pad(w, ((0, d_out_p - d_out), (0, d_in_p - d_in)))

    # One fused QKV weight slab (non-transposed layout), scale folded into the
    # query rows in f32 before the bf16 cast.
    w_qkv = jnp.concatenate(
        [pad_w(w_query * scale), pad_w(w_key), pad_w(w_value)], axis=0
    ).astype(jnp.bfloat16)            # [3*d_out_p, d_in_p] bf16

    kernel = functools.partial(
        _self_attention_kernel, seq=seq, d_out_p=d_out_p
    )

    full2d = lambda shape: pl.BlockSpec(shape, lambda: (0, 0))

    out_p = pl.pallas_call(
        kernel,
        out_shape=jax.ShapeDtypeStruct((seq_p, d_out_p), x.dtype),
        in_specs=[
            full2d((seq_p, d_in_p)),
            full2d((3 * d_out_p, d_in_p)),
        ],
        out_specs=full2d((seq_p, d_out_p)),
        compiler_params=pltpu.CompilerParams(vmem_limit_bytes=8 << 20),
    )(x_p, w_qkv)

    # Drop the padded query rows and padded output lanes.
    return out_p[:seq, :d_out]


def _reference(x, w_query, w_key, w_value):
    # Pure-JAX f32 reference mirroring the PyTorch forward.
    q = x @ w_query.T
    k = x @ w_key.T
    v = x @ w_value.T
    scores = q @ k.T
    weights = jax.nn.softmax(scores / (k.shape[-1] ** 0.5), axis=-1)
    return weights @ v


if __name__ == "__main__":
    # Shapes from the spec: 6 tokens, d_in=3, d_out=2 (the book's example).
    inputs = jnp.array(
        [[0.43, 0.15, 0.89],
         [0.55, 0.87, 0.66],
         [0.57, 0.85, 0.64],
         [0.22, 0.58, 0.33],
         [0.77, 0.25, 0.10],
         [0.05, 0.80, 0.55]], dtype=jnp.float32)
    d_in, d_out = inputs.shape[1], 2

    key = jax.random.PRNGKey(0)
    kq, kk, kv = jax.random.split(key, 3)
    # Deterministic parameters in nn.Linear weight layout: [d_out, d_in].
    w_query = jax.random.uniform(kq, (d_out, d_in), jnp.float32, -0.5, 0.5)
    w_key = jax.random.uniform(kk, (d_out, d_in), jnp.float32, -0.5, 0.5)
    w_value = jax.random.uniform(kv, (d_out, d_in), jnp.float32, -0.5, 0.5)

    out = self_attention_v2(inputs, w_query, w_key, w_value)
    out = jax.block_until_ready(out)

    ref = _reference(inputs, w_query, w_key, w_value)
    assert out.shape == (inputs.shape[0], d_out)
    # Tolerance loosened for bf16 MXU operands + approx reciprocal.
    assert jnp.allclose(out, ref, atol=2e-2, rtol=2e-2), "mismatch vs reference"

    print("KERNEL_OK")
</pallas_src>

<mosaic_0001>
module attributes {stable_mosaic.version = 11 : i64} {
  func.func @_self_attention_kernel(%arg0: memref<16x128xbf16, #tpu.memory_space<vmem>>, %arg1: memref<384x128xbf16, #tpu.memory_space<vmem>>, %arg2: memref<16x128xf32, #tpu.memory_space<vmem>>) attributes {dimension_semantics = [], scalar_prefetch = 0 : i64, scratch_operands = 0 : i64, tpu.core_type = #tpu.core_type<tc>} {
    %c0 = arith.constant 0 : index
    %c0_0 = arith.constant 0 : index
    %0 = vector.load %arg0[%c0, %c0_0] : memref<16x128xbf16, #tpu.memory_space<vmem>>, vector<16x128xbf16>
    %c0_1 = arith.constant 0 : index
    %c0_2 = arith.constant 0 : index
    %1 = vector.load %arg1[%c0_1, %c0_2] : memref<384x128xbf16, #tpu.memory_space<vmem>>, vector<384x128xbf16>
    %cst = arith.constant dense<0.000000e+00> : vector<16x384xf32>
    %2 = tpu.matmul %0, %1, %cst {dimension_numbers = #tpu.dot_dimension_numbers<[1], [1], [0], [0], [0, 0, 1, 0], [], []>} : vector<16x128xbf16>, vector<384x128xbf16>, vector<16x384xf32> -> vector<16x384xf32>
    %3 = vector.extract_strided_slice %2 {offsets = [0, 0], sizes = [16, 128], strides = [1, 1]} : vector<16x384xf32> to vector<16x128xf32>
    %4 = arith.truncf %3 : vector<16x128xf32> to vector<16x128xbf16>
    %5 = vector.extract_strided_slice %2 {offsets = [0, 128], sizes = [16, 128], strides = [1, 1]} : vector<16x384xf32> to vector<16x128xf32>
    %6 = arith.truncf %5 : vector<16x128xf32> to vector<16x128xbf16>
    %7 = vector.extract_strided_slice %2 {offsets = [0, 256], sizes = [16, 128], strides = [1, 1]} : vector<16x384xf32> to vector<16x128xf32>
    %8 = arith.truncf %7 : vector<16x128xf32> to vector<16x128xbf16>
    %cst_3 = arith.constant dense<0.000000e+00> : vector<16x16xf32>
    %9 = tpu.matmul %4, %6, %cst_3 {dimension_numbers = #tpu.dot_dimension_numbers<[1], [1], [0], [0], [0, 0, 1, 0], [], []>} : vector<16x128xbf16>, vector<16x128xbf16>, vector<16x16xf32> -> vector<16x16xf32>
    %10 = tpu.iota {dimensions = array<i32: 1>} : vector<16x16xi32>
    %c6_i32 = arith.constant 6 : i32
    %11 = vector.broadcast %c6_i32 : i32 to vector<16x16xi32>
    %12 = arith.cmpi slt, %10, %11 : vector<16x16xi32>
    %cst_4 = arith.constant -1.000000e+30 : f32
    %13 = vector.broadcast %cst_4 : f32 to vector<16x16xf32>
    %14 = arith.select %12, %9, %13 : vector<16x16xi1>, vector<16x16xf32>
    %cst_5 = arith.constant dense<0xFF800000> : vector<16xf32>
    %15 = vector.multi_reduction <maximumf>, %14, %cst_5 [1] : vector<16x16xf32> to vector<16xf32>
    %16 = vector.shape_cast %15 : vector<16xf32> to vector<16x1xf32>
    %17 = vector.broadcast %16 : vector<16x1xf32> to vector<16x16xf32>
    %18 = arith.subf %14, %17 : vector<16x16xf32>
    %19 = math.exp %18 : vector<16x16xf32>
    %cst_6 = arith.constant dense<0.000000e+00> : vector<16xf32>
    %20 = vector.multi_reduction <add>, %19, %cst_6 [1] : vector<16x16xf32> to vector<16xf32>
    %21 = vector.shape_cast %20 : vector<16xf32> to vector<16x1xf32>
    %22 = tpu.reciprocal %21 {approx = true} : vector<16x1xf32> -> vector<16x1xf32>
    %23 = vector.broadcast %22 : vector<16x1xf32> to vector<16x16xf32>
    %24 = arith.mulf %19, %23 : vector<16x16xf32>
    %25 = arith.truncf %24 : vector<16x16xf32> to vector<16x16xbf16>
    %cst_7 = arith.constant dense<0.000000e+00> : vector<16x128xf32>
    %26 = tpu.matmul %25, %8, %cst_7 {dimension_numbers = #tpu.dot_dimension_numbers<[1], [0], [0], [1], [0, 0, 1, 1], [], []>} : vector<16x16xbf16>, vector<16x128xbf16>, vector<16x128xf32> -> vector<16x128xf32>
    %c0_8 = arith.constant 0 : index
    %c0_9 = arith.constant 0 : index
    %27 = vector.load %arg2[%c0_8, %c0_9] : memref<16x128xf32, #tpu.memory_space<vmem>>, vector<16x128xf32>
    tpu.vector_store %arg2[%c0_8, %c0_9], %26 {strides = array<i32>} : memref<16x128xf32, #tpu.memory_space<vmem>>, vector<16x128xf32>,
    return
  }
}

</mosaic_0001>

<llo_original>
// kernel: tpu_custom_call.1
$region0: #{tpu_custom_call.1}
  #allocation0 [shape = 'u32[]', space=smem, size = 0x4, offset = 0x4, fixed_abs, tag = 'smem constant byte address 0x4 - core index']
  #allocation1 [shape = 'u32[144,128]{1,0:T(1,128)}', space=vmem, size = 0x12000, scoped, tag = 'internal scratch']
  %s0 = inlined_call_operand.hbm [shape: bf16[16,128], index: 0, kind: input, shape index: {}]
  %s1 = inlined_call_operand.hbm [shape: bf16[384,128], index: 1, kind: input, shape index: {}]
  %s2 = inlined_call_operand.hbm [shape: f32[16,128], index: 2, kind: output, shape index: {}]
  %s3 = sld [smem:[#allocation0]]
  $region26: #{tpu_custom_call.1} parent=0
    _
  %s5 = ssub.s32 1, %s3
  %s6 = scalar_select 0, %s5, %s3
  $region1: #{tpu_custom_call.1} parent=0
    #allocation2 [shape = 'u8[4096]{0}', space=vmem, size = 0x1000, scoped, tag = 'input window, operand 0, single buffered']
    #allocation3 [shape = 's32[1]{0}', space=sflag, size = 0x4, scoped, tag = 'scoped memory for tpu_custom_call.1']
    #allocation4 [shape = 's32[1]{0}', space=sflag, size = 0x4, scoped, tag = 'scoped memory for tpu_custom_call.1']
    #allocation5 [shape = 'u8[98304]{0}', space=vmem, size = 0x18000, scoped, tag = 'input window, operand 1, single buffered']
    #allocation6 [shape = 's32[1]{0}', space=sflag, size = 0x4, scoped, tag = 'scoped memory for tpu_custom_call.1']
    #allocation7 [shape = 'u8[8192]{0}', space=vmem, size = 0x2000, scoped, tag = 'output window, operand 0, single buffered']
    %7 = vsyncpa [#allocation3], 0
    %8 = vsyncpa [#allocation6], 0
    %9 = vsyncpa [#allocation4], 0
    // Predicated region
    $region2: #{tpu_custom_call.1} parent=1 // pred_check
      _
    $region3: #{tpu_custom_call.1} parent=1 // pred_check_branch
      %11 = sbr.rel (0) target = $region5
    $region4: #{tpu_custom_call.1} parent=1 // pred_region
      %s13 = ssub.s32 128, 128
      %14 = vsyncadd [#allocation3], %s13
      %s15 = sshll.u32 [#allocation2], 4
      %s16 = int_to_ptr.vmem [resolvable:$true] %s15
      %21 = dma.hbm_to_vmem [thread:$0]  %s0, 128, %s16, [#allocation3], 64, 64, 4
    $region5: #{tpu_custom_call.1} parent=1 // pred_fallthru
      _
    // Predicated region
    $region6: #{tpu_custom_call.1} parent=1 // pred_check
      _
    $region7: #{tpu_custom_call.1} parent=1 // pred_check_branch
      %23 = sbr.rel (0) target = $region9
    $region8: #{tpu_custom_call.1} parent=1 // pred_region
      %s25 = ssub.s32 3072, 3072
      %26 = vsyncadd [#allocation6], %s25
      %s27 = sshll.u32 [#allocation5], 4
      %s28 = int_to_ptr.vmem [resolvable:$true] %s27
      %33 = dma.hbm_to_vmem [thread:$0]  %s1, 3072, %s28, [#allocation6], 64, 64, 4
    $region9: #{tpu_custom_call.1} parent=1 // pred_fallthru
      _
    // Predicated region
    $region10: #{tpu_custom_call.1} parent=1 // pred_check
      _
    $region11: #{tpu_custom_call.1} parent=1 // pred_check_branch
      %35 = sbr.rel (0) target = $region13
    $region12: #{tpu_custom_call.1} parent=1 // pred_region
      %36 = dma.done [#allocation3], 128
    $region13: #{tpu_custom_call.1} parent=1 // pred_fallthru
      _
    // Predicated region
    $region14: #{tpu_custom_call.1} parent=1 // pred_check
      _
    $region15: #{tpu_custom_call.1} parent=1 // pred_check_branch
      %38 = sbr.rel (0) target = $region17
    $region16: #{tpu_custom_call.1} parent=1 // pred_region
      %39 = dma.done [#allocation6], 3072
    $region17: #{tpu_custom_call.1} parent=1 // pred_fallthru
      _
    %v41 = vld [vmem:[#allocation2] sm:$0xf]
    %v42 = vld [vmem:[#allocation2 + $0x4] sm:$0xf]
    %v43 = vld [vmem:[#allocation5] sm:$0xf]
    %v44 = vld [vmem:[#allocation5 + $0x4] sm:$0xf]
    %v45 = vld [vmem:[#allocation5 + $0x8] sm:$0xf]
    %v46 = vld [vmem:[#allocation5 + $0xc] sm:$0xf]
    %v47 = vld [vmem:[#allocation5 + $0x10] sm:$0xf]
    %v48 = vld [vmem:[#allocation5 + $0x14] sm:$0xf]
    %v49 = vld [vmem:[#allocation5 + $0x18] sm:$0xf]
    %v50 = vld [vmem:[#allocation5 + $0x1c] sm:$0xf]
    %v51 = vld [vmem:[#allocation5 + $0x20] sm:$0xf]
    %v52 = vld [vmem:[#allocation5 + $0x24] sm:$0xf]
    %v53 = vld [vmem:[#allocation5 + $0x28] sm:$0xf]
    %v54 = vld [vmem:[#allocation5 + $0x2c] sm:$0xf]
    %v55 = vld [vmem:[#allocation5 + $0x30] sm:$0xf]
    %v56 = vld [vmem:[#allocation5 + $0x34] sm:$0xf]
    %v57 = vld [vmem:[#allocation5 + $0x38] sm:$0xf]
    %v58 = vld [vmem:[#allocation5 + $0x3c] sm:$0xf]
    %v59 = vld [vmem:[#allocation5 + $0x40] sm:$0xf]
    %v60 = vld [vmem:[#allocation5 + $0x44] sm:$0xf]
    %v61 = vld [vmem:[#allocation5 + $0x48] sm:$0xf]
    %v62 = vld [vmem:[#allocation5 + $0x4c] sm:$0xf]
    %v63 = vld [vmem:[#allocation5 + $0x50] sm:$0xf]
    %v64 = vld [vmem:[#allocation5 + $0x54] sm:$0xf]
    %v65 = vld [vmem:[#allocation5 + $0x58] sm:$0xf]
    %v66 = vld [vmem:[#allocation5 + $0x5c] sm:$0xf]
    %v67 = vld [vmem:[#allocation5 + $0x60] sm:$0xf]
    %v68 = vld [vmem:[#allocation5 + $0x64] sm:$0xf]
    %v69 = vld [vmem:[#allocation5 + $0x68] sm:$0xf]
    %v70 = vld [vmem:[#allocation5 + $0x6c] sm:$0xf]
    %v71 = vld [vmem:[#allocation5 + $0x70] sm:$0xf]
    %v72 = vld [vmem:[#allocation5 + $0x74] sm:$0xf]
    %v73 = vld [vmem:[#allocation5 + $0x78] sm:$0xf]
    %v74 = vld [vmem:[#allocation5 + $0x7c] sm:$0xf]
    %v75 = vld [vmem:[#allocation5 + $0x80] sm:$0xf]
    %v76 = vld [vmem:[#allocation5 + $0x84] sm:$0xf]
    %v77 = vld [vmem:[#allocation5 + $0x88] sm:$0xf]
    %v78 = vld [vmem:[#allocation5 + $0x8c] sm:$0xf]
    %v79 = vld [vmem:[#allocation5 + $0x90] sm:$0xf]
    %v80 = vld [vmem:[#allocation5 + $0x94] sm:$0xf]
    %v81 = vld [vmem:[#allocation5 + $0x98] sm:$0xf]
    %v82 = vld [vmem:[#allocation5 + $0x9c] sm:$0xf]
    %v83 = vld [vmem:[#allocation5 + $0xa0] sm:$0xf]
    %v84 = vld [vmem:[#allocation5 + $0xa4] sm:$0xf]
    %v85 = vld [vmem:[#allocation5 + $0xa8] sm:$0xf]
    %v86 = vld [vmem:[#allocation5 + $0xac] sm:$0xf]
    %v87 = vld [vmem:[#allocation5 + $0xb0] sm:$0xf]
    %v88 = vld [vmem:[#allocation5 + $0xb4] sm:$0xf]
    %v89 = vld [vmem:[#allocation5 + $0xb8] sm:$0xf]
    %v90 = vld [vmem:[#allocation5 + $0xbc] sm:$0xf]
    %v93 = vunpack.c.l.b16 %v41
    %v94 = vunpack.c.l.b16 %v42
    %v95 = vpack.c.b16 %v94, %v93
    %v145 = vunpack.c.l.b16 %v43
    %v146 = vunpack.c.l.b16 %v44
    %v147 = vunpack.c.l.b16 %v45
    %v148 = vunpack.c.l.b16 %v46
    %v149 = vunpack.c.l.b16 %v47
    %v150 = vunpack.c.l.b16 %v48
    %v151 = vunpack.c.l.b16 %v49
    %v152 = vunpack.c.l.b16 %v50
    %v153 = vunpack.c.l.b16 %v51
    %v154 = vunpack.c.l.b16 %v52
    %v155 = vunpack.c.l.b16 %v53
    %v156 = vunpack.c.l.b16 %v54
    %v157 = vunpack.c.l.b16 %v55
    %v158 = vunpack.c.l.b16 %v56
    %v159 = vunpack.c.l.b16 %v57
    %v160 = vunpack.c.l.b16 %v58
    %v161 = vunpack.c.l.b16 %v59
    %v162 = vunpack.c.l.b16 %v60
    %v163 = vunpack.c.l.b16 %v61
    %v164 = vunpack.c.l.b16 %v62
    %v165 = vunpack.c.l.b16 %v63
    %v166 = vunpack.c.l.b16 %v64
    %v167 = vunpack.c.l.b16 %v65
    %v168 = vunpack.c.l.b16 %v66
    %v169 = vunpack.c.l.b16 %v67
    %v170 = vunpack.c.l.b16 %v68
    %v171 = vunpack.c.l.b16 %v69
    %v172 = vunpack.c.l.b16 %v70
    %v173 = vunpack.c.l.b16 %v71
    %v174 = vunpack.c.l.b16 %v72
    %v175 = vunpack.c.l.b16 %v73
    %v176 = vunpack.c.l.b16 %v74
    %v177 = vunpack.c.l.b16 %v75
    %v178 = vunpack.c.l.b16 %v76
    %v179 = vunpack.c.l.b16 %v77
    %v180 = vunpack.c.l.b16 %v78
    %v181 = vunpack.c.l.b16 %v79
    %v182 = vunpack.c.l.b16 %v80
    %v183 = vunpack.c.l.b16 %v81
    %v184 = vunpack.c.l.b16 %v82
    %v185 = vunpack.c.l.b16 %v83
    %v186 = vunpack.c.l.b16 %v84
    %v187 = vunpack.c.l.b16 %v85
    %v188 = vunpack.c.l.b16 %v86
    %v189 = vunpack.c.l.b16 %v87
    %v190 = vunpack.c.l.b16 %v88
    %v191 = vunpack.c.l.b16 %v89
    %v192 = vunpack.c.l.b16 %v90
    %v193 = vpack.c.b16 %v146, %v145
    %v194 = vpack.c.b16 %v148, %v147
    %v195 = vpack.c.b16 %v150, %v149
    %v196 = vpack.c.b16 %v152, %v151
    %v197 = vpack.c.b16 %v154, %v153
    %v198 = vpack.c.b16 %v156, %v155
    %v199 = vpack.c.b16 %v158, %v157
    %v200 = vpack.c.b16 %v160, %v159
    %v201 = vpack.c.b16 %v162, %v161
    %v202 = vpack.c.b16 %v164, %v163
    %v203 = vpack.c.b16 %v166, %v165
    %v204 = vpack.c.b16 %v168, %v167
    %v205 = vpack.c.b16 %v170, %v169
    %v206 = vpack.c.b16 %v172, %v171
    %v207 = vpack.c.b16 %v174, %v173
    %v208 = vpack.c.b16 %v176, %v175
    %v209 = vpack.c.b16 %v178, %v177
    %v210 = vpack.c.b16 %v180, %v179
    %v211 = vpack.c.b16 %v182, %v181
    %v212 = vpack.c.b16 %v184, %v183
    %v213 = vpack.c.b16 %v186, %v185
    %v214 = vpack.c.b16 %v188, %v187
    %v215 = vpack.c.b16 %v190, %v189
    %v216 = vpack.c.b16 %v192, %v191
    %241 = vmatprep.subr.bf16.mxu0 0
    %242 = vmatpush1.bf16.xpose.msra.mxu0 %v193
    %243 = vmatprep.subr.bf16.mxu0 0
    %244 = vmatpush1.bf16.xpose.msra.mxu0 %v194
    %245 = vmatprep.subr.bf16.mxu0 0
    %246 = vmatpush1.bf16.xpose.msra.mxu0 %v195
    %247 = vmatprep.subr.bf16.mxu0 0
    %248 = vmatpush1.bf16.xpose.msra.mxu0 %v196
    %249 = vmatprep.subr.bf16.mxu0 0
    %250 = vmatpush1.bf16.xpose.msra.mxu0 %v197
    %251 = vmatprep.subr.bf16.mxu0 0
    %252 = vmatpush1.bf16.xpose.msra.mxu0 %v198
    %253 = vmatprep.subr.bf16.mxu0 0
    %254 = vmatpush1.bf16.xpose.msra.mxu0 %v199
    %255 = vmatprep.subr.bf16.mxu0 0
    %256 = vmatpush1.bf16.xpose.msra.mxu0 %v200
    %257 = vmatprep.subr.bf16.mxu0 0
    %258 = vmatpush1.bf16.xpose.msra.mxu0 %v201
    %259 = vmatprep.subr.bf16.mxu0 0
    %260 = vmatpush1.bf16.xpose.msra.mxu0 %v202
    %261 = vmatprep.subr.bf16.mxu0 0
    %262 = vmatpush1.bf16.xpose.msra.mxu0 %v203
    %263 = vmatprep.subr.bf16.mxu0 0
    %264 = vmatpush1.bf16.xpose.msra.mxu0 %v204
    %265 = vmatprep.subr.bf16.mxu0 0
    %266 = vmatpush1.bf16.xpose.msra.mxu0 %v205
    %267 = vmatprep.subr.bf16.mxu0 0
    %268 = vmatpush1.bf16.xpose.msra.mxu0 %v206
    %269 = vmatprep.subr.bf16.mxu0 0
    %270 = vmatpush1.bf16.xpose.msra.mxu0 %v207
    %271 = vmatprep.subr.bf16.mxu0 0
    %272 = vmatpush1.bf16.xpose.msra.mxu0 %v208
    %273 = vmatprep.mubr.bf16.mxu0 0
    %274 = vmatmul.mubr.bf16.gmra.mrb[0].mxu0 %v95
    %v275 = vpop.f32.mrb[0].mxu0
    %v276 = vadd.f32 0.0, %v275
    %v277 = vpop.f32.mrb[0].mxu0
    %v278 = vadd.f32 0.0, %v277
    %v279 = vpop.f32.mrb[0].mxu0
    %v280 = vadd.f32 0.0, %v279
    %v281 = vpop.f32.mrb[0].mxu0
    %v282 = vadd.f32 0.0, %v281
    %283 = vdwg.mxu0
    %284 = vmatprep.subr.bf16.mxu0 0
    %285 = vmatpush1.bf16.xpose.msra.mxu0 %v209
    %286 = vmatprep.subr.bf16.mxu0 0
    %287 = vmatpush1.bf16.xpose.msra.mxu0 %v210
    %288 = vmatprep.subr.bf16.mxu0 0
    %289 = vmatpush1.bf16.xpose.msra.mxu0 %v211
    %290 = vmatprep.subr.bf16.mxu0 0
    %291 = vmatpush1.bf16.xpose.msra.mxu0 %v212
    %292 = vmatprep.subr.bf16.mxu0 0
    %293 = vmatpush1.bf16.xpose.msra.mxu0 %v213
    %294 = vmatprep.subr.bf16.mxu0 0
    %295 = vmatpush1.bf16.xpose.msra.mxu0 %v214
    %296 = vmatprep.subr.bf16.mxu0 0
    %297 = vmatpush1.bf16.xpose.msra.mxu0 %v215
    %298 = vmatprep.subr.bf16.mxu0 0
    %299 = vmatpush1.bf16.xpose.msra.mxu0 %v216
    %300 = vmatprep.subr.bf16.mxu0 0
    %301 = vmatpush1.bf16.xpose.msra.mxu0 0
    %302 = vmatprep.subr.bf16.mxu0 0
    %303 = vmatpush1.bf16.xpose.msra.mxu0 0
    %304 = vmatprep.subr.bf16.mxu0 0
    %305 = vmatpush1.bf16.xpose.msra.mxu0 0
    %306 = vmatprep.subr.bf16.mxu0 0
    %307 = vmatpush1.bf16.xpose.msra.mxu0 0
    %308 = vmatprep.subr.bf16.mxu0 0
    %309 = vmatpush1.bf16.xpose.msra.mxu0 0
    %310 = vmatprep.subr.bf16.mxu0 0
    %311 = vmatpush1.bf16.xpose.msra.mxu0 0
    %312 = vmatprep.subr.bf16.mxu0 0
    %313 = vmatpush1.bf16.xpose.msra.mxu0 0
    %314 = vmatprep.subr.bf16.mxu0 0
    %315 = vmatpush1.bf16.xpose.msra.mxu0 0
    %316 = vmatprep.mubr.bf16.mxu0 0
    %317 = vmatmul.mubr.bf16.gmra.mrb[0].mxu0 %v95
    %v318 = vpop.f32.mrb[0].mxu0
    %v319 = vadd.f32 0.0, %v318
    %v320 = vpop.f32.mrb[0].mxu0
    %v321 = vpop.f32.mrb[0].mxu0
    %v322 = vadd.f32 0.0, %v321
    %v323 = vpop.f32.mrb[0].mxu0
    %324 = vdwg.mxu0
    %v325 = vpack.c.bf16 %v280, %v276
    %v326 = vpack.c.bf16 %v282, %v278
    %v327 = vpack.c.bf16 %v322, %v319
    %328 = vmatprep.subr.bf16.mxu0 0
    %329 = vmatpush1.bf16.xpose.msra.mxu0 %v326
    %330 = vmatprep.subr.bf16.mxu0 0
    %331 = vmatpush1.bf16.xpose.msra.mxu0 0
    %332 = vmatprep.subr.bf16.mxu0 0
    %333 = vmatpush1.bf16.xpose.msra.mxu0 0
    %334 = vmatprep.subr.bf16.mxu0 0
    %335 = vmatpush1.bf16.xpose.msra.mxu0 0
    %336 = vmatprep.subr.bf16.mxu0 0
    %337 = vmatpush1.bf16.xpose.msra.mxu0 0
    %338 = vmatprep.subr.bf16.mxu0 0
    %339 = vmatpush1.bf16.xpose.msra.mxu0 0
    %340 = vmatprep.subr.bf16.mxu0 0
    %341 = vmatpush1.bf16.xpose.msra.mxu0 0
    %342 = vmatprep.subr.bf16.mxu0 0
    %343 = vmatpush1.bf16.xpose.msra.mxu0 0
    %344 = vmatprep.subr.bf16.mxu0 0
    %345 = vmatpush1.bf16.xpose.msra.mxu0 0
    %346 = vmatprep.subr.bf16.mxu0 0
    %347 = vmatpush1.bf16.xpose.msra.mxu0 0
    %348 = vmatprep.subr.bf16.mxu0 0
    %349 = vmatpush1.bf16.xpose.msra.mxu0 0
    %350 = vmatprep.subr.bf16.mxu0 0
    %351 = vmatpush1.bf16.xpose.msra.mxu0 0
    %352 = vmatprep.subr.bf16.mxu0 0
    %353 = vmatpush1.bf16.xpose.msra.mxu0 0
    %354 = vmatprep.subr.bf16.mxu0 0
    %355 = vmatpush1.bf16.xpose.msra.mxu0 0
    %356 = vmatprep.subr.bf16.mxu0 0
    %357 = vmatpush1.bf16.xpose.msra.mxu0 0
    %358 = vmatprep.subr.bf16.mxu0 0
    %359 = vmatpush1.bf16.xpose.msra.mxu0 0
    %360 = vmatprep.mubr.bf16.mxu0 0
    %361 = vmatmul.mubr.bf16.gmra.mrb[0].mxu0 %v325
    %v362 = vpop.f32.mrb[0].mxu0
    %v363 = vadd.f32 0.0, %v362
    %v364 = vpop.f32.mrb[0].mxu0
    %v365 = vpop.f32.mrb[0].mxu0
    %v366 = vadd.f32 0.0, %v365
    %v367 = vpop.f32.mrb[0].mxu0
    %368 = vdwg.mxu0
    %v369 = vlaneseq
    %v370 = vand.u32 %v369, 127
    %vm371 = vcmp.lt.s32.totalorder %v370, 6
    %v372 = vsel %vm371, %v363, -1e+30
    %v373 = vsel %vm371, %v366, -1e+30
    %vm374 = vcmask 130048
    %v375 = vsel %vm374, %v372, -inf
    %376 = vmax.xlane.f32.xlu0 %v375
    %v377 = vpop.xlane.xlu0 %376
    %v378 = vsel %vm374, %v373, -inf
    %379 = vmax.xlane.f32.xlu0 %v378
    %v380 = vpop.xlane.xlu0 %379
    %v381 = vsub.f32 %v372, %v377
    %v382 = vsub.f32 %v373, %v380
    %v383 = vmul.f32 %v381, 1.442695
    %v384 = vpow.pop %v383
    %v385 = vmul.f32 %v382, 1.442695
    %v386 = vpow.pop %v385
    %v387 = vsel %vm374, %v384, 0.0
    %388 = vadd.xlane.f32.xlu0 %v387
    %v389 = vpop.xlane.xlu0 %388
    %v390 = vsel %vm374, %v386, 0.0
    %391 = vadd.xlane.f32.xlu0 %v390
    %v392 = vpop.xlane.xlu0 %391
    %v393 = vrcp.pop %v389
    %v394 = vrcp.pop %v392
    %v395 = vmul.f32 %v384, %v393
    %v396 = vmul.f32 %v386, %v394
    %v397 = vpack.c.bf16 %v396, %v395
    %v399 = vsel %vm374, %v397, 0
    %401 = vmatprep.subr.bf16.mxu0 0
    %402 = vmatpush1.bf16.msra.mxu0 %v327
    %403 = vmatprep.subr.bf16.mxu0 0
    %404 = vmatpush1.bf16.msra.mxu0 0
    %405 = vmatprep.subr.bf16.mxu0 0
    %406 = vmatpush1.bf16.msra.mxu0 0
    %407 = vmatprep.subr.bf16.mxu0 0
    %408 = vmatpush1.bf16.msra.mxu0 0
    %409 = vmatprep.subr.bf16.mxu0 0
    %410 = vmatpush1.bf16.msra.mxu0 0
    %411 = vmatprep.subr.bf16.mxu0 0
    %412 = vmatpush1.bf16.msra.mxu0 0
    %413 = vmatprep.subr.bf16.mxu0 0
    %414 = vmatpush1.bf16.msra.mxu0 0
    %415 = vmatprep.subr.bf16.mxu0 0
    %416 = vmatpush1.bf16.msra.mxu0 0
    %417 = vmatprep.subr.bf16.mxu0 0
    %418 = vmatpush1.bf16.msra.mxu0 0
    %419 = vmatprep.subr.bf16.mxu0 0
    %420 = vmatpush1.bf16.msra.mxu0 0
    %421 = vmatprep.subr.bf16.mxu0 0
    %422 = vmatpush1.bf16.msra.mxu0 0
    %423 = vmatprep.subr.bf16.mxu0 0
    %424 = vmatpush1.bf16.msra.mxu0 0
    %425 = vmatprep.subr.bf16.mxu0 0
    %426 = vmatpush1.bf16.msra.mxu0 0
    %427 = vmatprep.subr.bf16.mxu0 0
    %428 = vmatpush1.bf16.msra.mxu0 0
    %429 = vmatprep.subr.bf16.mxu0 0
    %430 = vmatpush1.bf16.msra.mxu0 0
    %431 = vmatprep.subr.bf16.mxu0 0
    %432 = vmatpush1.bf16.msra.mxu0 0
    %433 = vmatprep.mubr.bf16.mxu0 0
    %434 = vmatmul.mubr.bf16.gmra.mrb[0].mxu0 %v399
    %v435 = vpop.f32.mrb[0].mxu0
    %v436 = vadd.f32 0.0, %v435
    %v437 = vpop.f32.mrb[0].mxu0
    %v438 = vpop.f32.mrb[0].mxu0
    %v439 = vadd.f32 0.0, %v438
    %v440 = vpop.f32.mrb[0].mxu0
    %441 = vdwg.mxu0
    %442 = vst [vmem:[#allocation7] sm:$0xff] %v436
    %443 = vst [vmem:[#allocation7 + $0x8] sm:$0xff] %v439
    // Predicated region
    $region18: #{tpu_custom_call.1} parent=1 // pred_check
      _
    $region19: #{tpu_custom_call.1} parent=1 // pred_check_branch
      %445 = sbr.rel (0) target = $region21
    $region20: #{tpu_custom_call.1} parent=1 // pred_region
      %s447 = ssub.s32 256, 256
      %448 = vsyncadd [#allocation4], %s447
      %s449 = sshll.u32 [#allocation7], 4
      %s450 = int_to_ptr.vmem [resolvable:$true] %s449
      %455 = dma.vmem_to_hbm [thread:$0]  %s450, 256, %s2, [#allocation4], 128, 128, 8
    $region21: #{tpu_custom_call.1} parent=1 // pred_fallthru
      _
    // Predicated region
    $region22: #{tpu_custom_call.1} parent=1 // pred_check
      _
    $region23: #{tpu_custom_call.1} parent=1 // pred_check_branch
      %457 = sbr.rel (0) target = $region25
    $region24: #{tpu_custom_call.1} parent=1 // pred_region
      %458 = dma.done [#allocation4], 256
    $region25: #{tpu_custom_call.1} parent=1 // pred_fallthru
      _
    %459 = vsyncpa [#allocation3], 1
    %460 = vsyncpa [#allocation6], 1
    %461 = vsyncpa [#allocation4], 1

</llo_original>
